<compile_context>
chip_gen: v5e
topology: v5e:2x2
jax: 0.10.0
libtpu: 0.0.40
codegen_flags: <defaults>
</compile_context>

<pallas_src>
import jax
import jax.numpy as jnp
from jax import lax
from jax.experimental import pallas as pl
from jax.experimental.pallas import tpu as pltpu


def _weighted_ic_loss_kernel(x_ref, y_ref, o_ref):
    # x_ref, y_ref: [F, N] in VMEM (softmax axis N on lanes); o_ref: [1, 1].
    x = x_ref[...].astype(jnp.float32)
    y = y_ref[...].astype(jnp.float32)

    # w = softmax over the original dim 0 (now the lane axis): per-row softmax.
    m = jnp.max(x, axis=-1, keepdims=True)            # (F, 1)
    w = jnp.exp(x - m)                                 # e, overwritten below
    inv = 1.0 / jnp.sum(w, axis=-1, keepdims=True)     # (F, 1): F reciprocals only
    w = w * inv                                        # normalized weights

    # Weighted means over ALL elements (matches torch.sum with no dim).
    mean_x = jnp.sum(w * x, keepdims=True)             # (1, 1)
    mean_y = jnp.sum(w * y, keepdims=True)             # (1, 1)

    dx = x - mean_x
    dy = y - mean_y
    t = w * dx                                         # shared by cov_xy and var_x

    cov_xy = jnp.sum(t * dy, keepdims=True)            # (1, 1)
    var_x = jnp.sum(t * dx, keepdims=True)             # (1, 1)
    var_y = jnp.sum(w * dy * dy, keepdims=True)        # (1, 1)

    # corr = cov / sqrt(var_x * var_y); exact rsqrt on the (idle) EUP slot.
    corr = cov_xy * lax.rsqrt(var_x * var_y)
    o_ref[...] = -corr                                 # loss = -corr


def weighted_ic_loss(logits, target):
    """Pallas implementation of WeightedICLoss.forward(logits, target)."""
    assert logits.shape == target.shape and logits.ndim >= 1
    n = logits.shape[0]
    # Present a lane-dense layout: softmax axis (dim 0) becomes the last axis.
    x = logits.reshape(n, -1).T   # [F, N]
    y = target.reshape(n, -1).T   # [F, N]

    out = pl.pallas_call(
        _weighted_ic_loss_kernel,
        out_shape=jax.ShapeDtypeStruct((1, 1), jnp.float32),
        in_specs=[
            pl.BlockSpec(memory_space=pltpu.VMEM),
            pl.BlockSpec(memory_space=pltpu.VMEM),
        ],
        out_specs=pl.BlockSpec(memory_space=pltpu.VMEM),
    )(x, y)
    return out[0, 0]


def _reference(logits, target):
    # Pure-JAX reference mirroring the PyTorch module exactly.
    x = logits.astype(jnp.float32)
    y = target.astype(jnp.float32)
    w = jax.nn.softmax(x, axis=0)
    mean_x = jnp.sum(w * x)
    mean_y = jnp.sum(w * y)
    cov_xy = jnp.sum(w * (x - mean_x) * (y - mean_y))
    var_x = jnp.sum(w * (x - mean_x) ** 2)
    var_y = jnp.sum(w * (y - mean_y) ** 2)
    return -(cov_xy / jnp.sqrt(var_x * var_y))


if __name__ == "__main__":
    key = jax.random.PRNGKey(0)
    k1, k2 = jax.random.split(key)
    # Small shape consistent with the forward: logits/target of identical shape,
    # softmax taken over dim 0.
    N, F = 128, 8
    logits = jax.random.normal(k1, (N, F), dtype=jnp.float32)
    target = 0.3 * logits + jax.random.normal(k2, (N, F), dtype=jnp.float32)

    loss = jax.block_until_ready(weighted_ic_loss(logits, target))
    ref = jax.block_until_ready(_reference(logits, target))

    assert jnp.allclose(loss, ref, atol=1e-5, rtol=1e-5), (loss, ref)
    print("KERNEL_OK")
</pallas_src>

<mosaic_0001>
module attributes {stable_mosaic.version = 11 : i64} {
  func.func @_weighted_ic_loss_kernel(%arg0: memref<8x128xf32, #tpu.memory_space<vmem>>, %arg1: memref<8x128xf32, #tpu.memory_space<vmem>>, %arg2: memref<1x1xf32, #tpu.memory_space<vmem>>) attributes {dimension_semantics = [], scalar_prefetch = 0 : i64, scratch_operands = 0 : i64, tpu.core_type = #tpu.core_type<tc>} {
    %c0 = arith.constant 0 : index
    %c0_0 = arith.constant 0 : index
    %0 = vector.load %arg0[%c0, %c0_0] : memref<8x128xf32, #tpu.memory_space<vmem>>, vector<8x128xf32>
    %c0_1 = arith.constant 0 : index
    %c0_2 = arith.constant 0 : index
    %1 = vector.load %arg1[%c0_1, %c0_2] : memref<8x128xf32, #tpu.memory_space<vmem>>, vector<8x128xf32>
    %cst = arith.constant dense<0xFF800000> : vector<8xf32>
    %2 = vector.multi_reduction <maximumf>, %0, %cst [1] : vector<8x128xf32> to vector<8xf32>
    %3 = vector.shape_cast %2 : vector<8xf32> to vector<8x1xf32>
    %4 = vector.broadcast %3 : vector<8x1xf32> to vector<8x128xf32>
    %5 = arith.subf %0, %4 : vector<8x128xf32>
    %6 = math.exp %5 : vector<8x128xf32>
    %cst_3 = arith.constant dense<0.000000e+00> : vector<8xf32>
    %7 = vector.multi_reduction <add>, %6, %cst_3 [1] : vector<8x128xf32> to vector<8xf32>
    %8 = vector.shape_cast %7 : vector<8xf32> to vector<8x1xf32>
    %cst_4 = arith.constant 1.000000e+00 : f32
    %9 = vector.broadcast %cst_4 : f32 to vector<8x1xf32>
    %10 = arith.divf %9, %8 : vector<8x1xf32>
    %11 = vector.broadcast %10 : vector<8x1xf32> to vector<8x128xf32>
    %12 = arith.mulf %6, %11 : vector<8x128xf32>
    %13 = arith.mulf %12, %0 : vector<8x128xf32>
    %14 = vector.shape_cast %13 : vector<8x128xf32> to vector<1x8x128xf32>
    %cst_5 = arith.constant dense<0.000000e+00> : vector<1xf32>
    %15 = vector.multi_reduction <add>, %14, %cst_5 [1, 2] : vector<1x8x128xf32> to vector<1xf32>
    %16 = vector.shape_cast %15 : vector<1xf32> to vector<1x1x1xf32>
    %17 = vector.extract %16[0, 0, 0] : f32 from vector<1x1x1xf32>
    %18 = vector.broadcast %17 : f32 to vector<1x1xf32>
    %19 = arith.mulf %12, %1 : vector<8x128xf32>
    %20 = vector.shape_cast %19 : vector<8x128xf32> to vector<1x8x128xf32>
    %cst_6 = arith.constant dense<0.000000e+00> : vector<1xf32>
    %21 = vector.multi_reduction <add>, %20, %cst_6 [1, 2] : vector<1x8x128xf32> to vector<1xf32>
    %22 = vector.shape_cast %21 : vector<1xf32> to vector<1x1x1xf32>
    %23 = vector.extract %22[0, 0, 0] : f32 from vector<1x1x1xf32>
    %24 = vector.broadcast %23 : f32 to vector<1x1xf32>
    %25 = vector.broadcast %18 : vector<1x1xf32> to vector<8x128xf32>
    %26 = arith.subf %0, %25 : vector<8x128xf32>
    %27 = vector.broadcast %24 : vector<1x1xf32> to vector<8x128xf32>
    %28 = arith.subf %1, %27 : vector<8x128xf32>
    %29 = arith.mulf %12, %26 : vector<8x128xf32>
    %30 = arith.mulf %29, %28 : vector<8x128xf32>
    %31 = vector.shape_cast %30 : vector<8x128xf32> to vector<1x8x128xf32>
    %cst_7 = arith.constant dense<0.000000e+00> : vector<1xf32>
    %32 = vector.multi_reduction <add>, %31, %cst_7 [1, 2] : vector<1x8x128xf32> to vector<1xf32>
    %33 = vector.shape_cast %32 : vector<1xf32> to vector<1x1x1xf32>
    %34 = vector.extract %33[0, 0, 0] : f32 from vector<1x1x1xf32>
    %35 = vector.broadcast %34 : f32 to vector<1x1xf32>
    %36 = arith.mulf %29, %26 : vector<8x128xf32>
    %37 = vector.shape_cast %36 : vector<8x128xf32> to vector<1x8x128xf32>
    %cst_8 = arith.constant dense<0.000000e+00> : vector<1xf32>
    %38 = vector.multi_reduction <add>, %37, %cst_8 [1, 2] : vector<1x8x128xf32> to vector<1xf32>
    %39 = vector.shape_cast %38 : vector<1xf32> to vector<1x1x1xf32>
    %40 = vector.extract %39[0, 0, 0] : f32 from vector<1x1x1xf32>
    %41 = vector.broadcast %40 : f32 to vector<1x1xf32>
    %42 = arith.mulf %12, %28 : vector<8x128xf32>
    %43 = arith.mulf %42, %28 : vector<8x128xf32>
    %44 = vector.shape_cast %43 : vector<8x128xf32> to vector<1x8x128xf32>
    %cst_9 = arith.constant dense<0.000000e+00> : vector<1xf32>
    %45 = vector.multi_reduction <add>, %44, %cst_9 [1, 2] : vector<1x8x128xf32> to vector<1xf32>
    %46 = vector.shape_cast %45 : vector<1xf32> to vector<1x1x1xf32>
    %47 = vector.extract %46[0, 0, 0] : f32 from vector<1x1x1xf32>
    %48 = vector.broadcast %47 : f32 to vector<1x1xf32>
    %49 = arith.mulf %41, %48 : vector<1x1xf32>
    %50 = math.rsqrt %49 : vector<1x1xf32>
    %51 = arith.mulf %35, %50 : vector<1x1xf32>
    %cst_10 = arith.constant 0.000000e+00 : f32
    %52 = vector.broadcast %cst_10 : f32 to vector<1x1xf32>
    %53 = arith.subf %52, %51 : vector<1x1xf32>
    %c0_11 = arith.constant 0 : index
    %c0_12 = arith.constant 0 : index
    %54 = vector.load %arg2[%c0_11, %c0_12] : memref<1x1xf32, #tpu.memory_space<vmem>>, vector<1x1xf32>
    tpu.vector_store %arg2[%c0_11, %c0_12], %53 {strides = array<i32>} : memref<1x1xf32, #tpu.memory_space<vmem>>, vector<1x1xf32>,
    return
  }
}

</mosaic_0001>

<llo_original>
// kernel: tpu_custom_call.1
$region0: #{tpu_custom_call.1}
  #allocation0 [shape = 'u32[]', space=smem, size = 0x4, offset = 0x4, fixed_abs, tag = 'smem constant byte address 0x4 - core index']
  #allocation1 [shape = 'u32[72,128]{1,0:T(1,128)}', space=vmem, size = 0x9000, scoped, tag = 'internal scratch']
  %s0 = inlined_call_operand.hbm [shape: f32[8,128], index: 0, kind: input, shape index: {}]
  %s1 = inlined_call_operand.hbm [shape: f32[8,128], index: 1, kind: input, shape index: {}]
  %s2 = inlined_call_operand.hbm [shape: f32[1,1], index: 2, kind: output, shape index: {}]
  %s3 = sld [smem:[#allocation0]]
  $region26: #{tpu_custom_call.1} parent=0
    _
  %s5 = ssub.s32 1, %s3
  %s6 = scalar_select 0, %s5, %s3
  $region1: #{tpu_custom_call.1} parent=0
    #allocation2 [shape = 'u8[4096]{0}', space=vmem, size = 0x1000, scoped, tag = 'input window, operand 0, single buffered']
    #allocation3 [shape = 's32[1]{0}', space=sflag, size = 0x4, scoped, tag = 'scoped memory for tpu_custom_call.1']
    #allocation4 [shape = 's32[1]{0}', space=sflag, size = 0x4, scoped, tag = 'scoped memory for tpu_custom_call.1']
    #allocation5 [shape = 'u8[4096]{0}', space=vmem, size = 0x1000, scoped, tag = 'input window, operand 1, single buffered']
    #allocation6 [shape = 's32[1]{0}', space=sflag, size = 0x4, scoped, tag = 'scoped memory for tpu_custom_call.1']
    #allocation7 [shape = 'u8[512]{0}', space=vmem, size = 0x400, scoped, tag = 'output window, operand 0, single buffered']
    %7 = vsyncpa [#allocation3], 0
    %8 = vsyncpa [#allocation6], 0
    %9 = vsyncpa [#allocation4], 0
    // Predicated region
    $region2: #{tpu_custom_call.1} parent=1 // pred_check
      _
    $region3: #{tpu_custom_call.1} parent=1 // pred_check_branch
      %11 = sbr.rel (0) target = $region5
    $region4: #{tpu_custom_call.1} parent=1 // pred_region
      %13 = vsyncadd [#allocation3], 0
      %s15 = sshll.u32 %s0, 4
      %s16 = int_to_ptr.hbm [resolvable:$true] %s15
      %s17 = sshll.u32 [#allocation2], 4
      %s18 = int_to_ptr.vmem [resolvable:$true] %s17
      %20 = dma.hbm_to_vmem [thread:$0]  %s16, 128, %s18, [#allocation3]
    $region5: #{tpu_custom_call.1} parent=1 // pred_fallthru
      _
    // Predicated region
    $region6: #{tpu_custom_call.1} parent=1 // pred_check
      _
    $region7: #{tpu_custom_call.1} parent=1 // pred_check_branch
      %22 = sbr.rel (0) target = $region9
    $region8: #{tpu_custom_call.1} parent=1 // pred_region
      %24 = vsyncadd [#allocation6], 0
      %s26 = sshll.u32 %s1, 4
      %s27 = int_to_ptr.hbm [resolvable:$true] %s26
      %s28 = sshll.u32 [#allocation5], 4
      %s29 = int_to_ptr.vmem [resolvable:$true] %s28
      %31 = dma.hbm_to_vmem [thread:$0]  %s27, 128, %s29, [#allocation6]
    $region9: #{tpu_custom_call.1} parent=1 // pred_fallthru
      _
    // Predicated region
    $region10: #{tpu_custom_call.1} parent=1 // pred_check
      _
    $region11: #{tpu_custom_call.1} parent=1 // pred_check_branch
      %33 = sbr.rel (0) target = $region13
    $region12: #{tpu_custom_call.1} parent=1 // pred_region
      %35 = dma.done [#allocation3], 128
    $region13: #{tpu_custom_call.1} parent=1 // pred_fallthru
      _
    // Predicated region
    $region14: #{tpu_custom_call.1} parent=1 // pred_check
      _
    $region15: #{tpu_custom_call.1} parent=1 // pred_check_branch
      %37 = sbr.rel (0) target = $region17
    $region16: #{tpu_custom_call.1} parent=1 // pred_region
      %39 = dma.done [#allocation6], 128
    $region17: #{tpu_custom_call.1} parent=1 // pred_fallthru
      _
    %v40 = vld [vmem:[#allocation2] sm:$0xff]
    %v41 = vld [vmem:[#allocation5] sm:$0xff]
    %42 = vmax.xlane.f32.xlu0 %v40
    %v43 = vpop.xlane.xlu0 %42
    %v44 = vsub.f32 %v40, %v43
    %v45 = vmul.f32 %v44, 1.442695
    %v46 = vpow.pop %v45
    %47 = vadd.xlane.f32.xlu0 %v46
    %v48 = vpop.xlane.xlu0 %47
    %v49 = vrcp.pop %v48
    %v50 = vmul.f32 %v48, %v49
    %v51 = vsub.f32 1.0, %v50
    %v52 = vmul.f32 %v49, %v51
    %v53 = vadd.f32 %v49, %v52
    %vm54 = vweird.f32 %v48
    %vm55 = vweird.f32 %v49
    %vm56 = vmor %vm54, %vm55
    %v57 = vsel %vm56, %v49, %v53
    %v58 = vand.u32 2147483647, %v48
    %vm59 = vcmp.eq.f32.partialorder %v58, 8.507059e+37
    %v60 = vand.u32 %v48, 2147483648
    %v61 = vor.u32 1.1754944e-38, %v60
    %v62 = vsel %vm59, %v61, %v57
    %v63 = vmul.f32 1.0, %v62
    %v64 = vmul.f32 %v46, %v63
    %v65 = vmul.f32 %v64, %v40
    %66 = vadd.xlane.f32.xlu0 %v65
    %v67 = vpop.xlane.xlu0 %66
    %v68 = vrot.slane %v67, 4
    %v69 = vadd.f32 %v67, %v68
    %v70 = vrot.slane %v69, 2
    %v71 = vadd.f32 %v69, %v70
    %v72 = vrot.slane %v71, 1
    %v73 = vadd.f32 %v71, %v72
    %s74 = vtos %v73
    %v75 = vmul.f32 %v64, %v41
    %76 = vadd.xlane.f32.xlu0 %v75
    %v77 = vpop.xlane.xlu0 %76
    %v78 = vrot.slane %v77, 4
    %v79 = vadd.f32 %v77, %v78
    %v80 = vrot.slane %v79, 2
    %v81 = vadd.f32 %v79, %v80
    %v82 = vrot.slane %v81, 1
    %v83 = vadd.f32 %v81, %v82
    %s84 = vtos %v83
    %v85 = vstv %s74
    %v86 = vsub.f32 %v40, %v85
    %v87 = vstv %s84
    %v88 = vsub.f32 %v41, %v87
    %v89 = vmul.f32 %v64, %v86
    %v90 = vmul.f32 %v89, %v88
    %91 = vadd.xlane.f32.xlu0 %v90
    %v92 = vpop.xlane.xlu0 %91
    %v93 = vrot.slane %v92, 4
    %v94 = vadd.f32 %v92, %v93
    %v95 = vrot.slane %v94, 2
    %v96 = vadd.f32 %v94, %v95
    %v97 = vrot.slane %v96, 1
    %v98 = vadd.f32 %v96, %v97
    %s99 = vtos %v98
    %v100 = vstv %s99
    %v101 = vmul.f32 %v89, %v86
    %102 = vadd.xlane.f32.xlu0 %v101
    %v103 = vpop.xlane.xlu0 %102
    %v104 = vrot.slane %v103, 4
    %v105 = vadd.f32 %v103, %v104
    %v106 = vrot.slane %v105, 2
    %v107 = vadd.f32 %v105, %v106
    %v108 = vrot.slane %v107, 1
    %v109 = vadd.f32 %v107, %v108
    %s110 = vtos %v109
    %v111 = vstv %s110
    %v112 = vmul.f32 %v64, %v88
    %v113 = vmul.f32 %v112, %v88
    %114 = vadd.xlane.f32.xlu0 %v113
    %v115 = vpop.xlane.xlu0 %114
    %v116 = vrot.slane %v115, 4
    %v117 = vadd.f32 %v115, %v116
    %v118 = vrot.slane %v117, 2
    %v119 = vadd.f32 %v117, %v118
    %v120 = vrot.slane %v119, 1
    %v121 = vadd.f32 %v119, %v120
    %s122 = vtos %v121
    %v123 = vstv %s122
    %v124 = vmul.f32 %v111, %v123
    %v125 = vrsqrt.pop %v124
    %v126 = vmul.f32 %v125, %v124
    %v127 = vmul.f32 %v126, %v125
    %v128 = vmul.f32 0.5, %v127
    %v129 = vsub.f32 1.5, %v128
    %v130 = vmul.f32 %v125, %v129
    %vm131 = vweird.f32 %v124
    %vm132 = vweird.f32 %v125
    %vm133 = vmor %vm131, %vm132
    %v134 = vsel %vm133, %v125, %v130
    %v135 = vmul.f32 %v100, %v134
    %v136 = vsub.f32 0.0, %v135
    %vm137 = vcmask 0
    %138 = vst.msk [vmem:[#allocation7] sm:$0x1] %vm137, %v136
    // Predicated region
    $region18: #{tpu_custom_call.1} parent=1 // pred_check
      _
    $region19: #{tpu_custom_call.1} parent=1 // pred_check_branch
      %140 = sbr.rel (0) target = $region21
    $region20: #{tpu_custom_call.1} parent=1 // pred_region
      %142 = vsyncadd [#allocation4], 0
      %s144 = sshll.u32 [#allocation7], 4
      %s145 = int_to_ptr.vmem [resolvable:$true] %s144
      %s146 = sshll.u32 %s2, 4
      %s147 = int_to_ptr.hbm [resolvable:$true] %s146
      %149 = dma.vmem_to_hbm [thread:$0]  %s145, 16, %s147, [#allocation4]
    $region21: #{tpu_custom_call.1} parent=1 // pred_fallthru
      _
    // Predicated region
    $region22: #{tpu_custom_call.1} parent=1 // pred_check
      _
    $region23: #{tpu_custom_call.1} parent=1 // pred_check_branch
      %151 = sbr.rel (0) target = $region25
    $region24: #{tpu_custom_call.1} parent=1 // pred_region
      %153 = dma.done [#allocation4], 16
    $region25: #{tpu_custom_call.1} parent=1 // pred_fallthru
      _
    %154 = vsyncpa [#allocation3], 1
    %155 = vsyncpa [#allocation6], 1
    %156 = vsyncpa [#allocation4], 1

</llo_original>
